<compile_context>
chip_gen: v5e
topology: v5e:2x2
jax: 0.10.0
libtpu: 0.0.40
codegen_flags: <defaults>
</compile_context>

<pallas_src>
import functools

import jax
import jax.numpy as jnp
from jax import lax
from jax.experimental import pallas as pl
from jax.experimental.pallas import tpu as pltpu

_SUBLANES = 8    # f32 sublane count per vreg
_LANES = 128     # lane count per vreg


def acceptor_lstm_kernel(x_ref, w_ih_ref, w_hh_ref, b_ref, w_lin_ref, b_lin_ref,
                         y_ref, *, seq_len, batch, hidden_dim, use_bf16_matmul):
    """Input projection + LSTM recurrence + final linear in one invocation.

    x_ref:     [T*B, E]   embedded inputs, time-major then batch (already flat)
    w_ih_ref:  [E, 4H]    gate columns pre-permuted to [i, f, o, g]
    w_hh_ref:  [H, 4H]    gate columns pre-permuted to [i, f, o, g]
    b_ref:     [1, 4H]    b_ih + b_hh, pre-permuted to [i, f, o, g]
    w_lin_ref: [H, Lp]
    b_lin_ref: [1, Lp]
    y_ref:     [B, Lp]
    """
    T, B, H = seq_len, batch, hidden_dim

    x_flat = x_ref[...]                                    # [T*B, E] f32
    w_ih = w_ih_ref[...]
    w_hh = w_hh_ref[...]
    w_lin = w_lin_ref[...]

    if use_bf16_matmul:
        # MXU operands only; accumulation and all state/activation math stay f32.
        x_mm = x_flat.astype(jnp.bfloat16)
        w_ih_mm = w_ih.astype(jnp.bfloat16)
        w_hh_mm = w_hh.astype(jnp.bfloat16)
        w_lin_mm = w_lin.astype(jnp.bfloat16)
    else:
        x_mm, w_ih_mm, w_hh_mm, w_lin_mm = x_flat, w_ih, w_hh, w_lin

    # Hoisted input projection: one [T*B, E] x [E, 4H] matmul + one bias
    # broadcast, off the serial recurrence. Stays in vregs (8 vregs at f32).
    gx = (jnp.dot(x_mm, w_ih_mm, preferred_element_type=jnp.float32)
          + b_ref[...])                                    # [T*B, 4H] f32

    h = jnp.zeros((B, H), jnp.float32)
    c = jnp.zeros((B, H), jnp.float32)

    # T is static and small: a Python loop == full unroll, so LLO can overlap
    # MXU / EUP / VPU work across steps; gx slices are static sublane slices.
    # TODO(synk): for long sequences / big batches, switch back to a VMEM gx
    # scratch + fori_loop (bounded live ranges) and hold W_hh resident in the
    # MXU via pltpu.matmul_push_rhs/matmul_acc_lhs/matmul_pop.
    for t in range(T):
        gx_t = gx[t * B:(t + 1) * B, :]                    # [B, 4H], static slice
        h_mm = h.astype(jnp.bfloat16) if use_bf16_matmul else h
        # Only the unavoidable recurrent matmul stays on the serial chain.
        gates = gx_t + jnp.dot(h_mm, w_hh_mm,
                               preferred_element_type=jnp.float32)  # [B, 4H] f32
        # Gate layout pre-permuted to [i, f, o, g]:
        #   one 96-lane sigmoid issue + one 32-lane tanh issue per step.
        sig = jax.nn.sigmoid(gates[:, :3 * H])             # [B, 3H]
        i_g = sig[:, 0:H]
        f_g = sig[:, H:2 * H]
        o_g = sig[:, 2 * H:3 * H]
        g_g = jnp.tanh(gates[:, 3 * H:4 * H])
        c = f_g * c + i_g * g_g
        h = o_g * jnp.tanh(c)

    # Final linear: y = h_T @ W_lin + b_lin  (single lane-dense [B, 128] store).
    h_mm = h.astype(jnp.bfloat16) if use_bf16_matmul else h
    y_ref[...] = (jnp.dot(h_mm, w_lin_mm, preferred_element_type=jnp.float32)
                  + b_lin_ref[...])


def _round_up(n, m):
    return (n + m - 1) // m * m


def _permute_gates_to_ifog(w):
    """Reorder the last axis (size 4H) from PyTorch's [i,f,g,o] to [i,f,o,g]."""
    H4 = w.shape[-1]
    H = H4 // 4
    return jnp.concatenate([w[..., :2 * H],          # i, f
                            w[..., 3 * H:4 * H],     # o
                            w[..., 2 * H:3 * H]],    # g
                           axis=-1)


def acceptor_lstm_forward(tokens, params, *, hidden_dim, use_bf16_matmul=True):
    """Full forward pass of AcceptorLSTM.

    tokens: [B, T] int32 token ids (batch_first, like the PyTorch module).
    Returns [B, labels_dim] float32 logits.
    """
    emb_table = params["embedding"]                        # [V, E], padding row zero
    # Embedding lookup (glue, plain JAX gather).
    x = jnp.take(emb_table, tokens, axis=0)                # [B, T, E]
    # nn.Dropout(p=0.5) is identity at inference time (module.eval()).
    # TODO(synk): training-mode dropout masking not implemented (inference semantics).
    x = jnp.transpose(x, (1, 0, 2)).astype(jnp.float32)    # [T, B, E] time-major

    T, B, E = x.shape
    L = params["b_linear"].shape[-1]
    H = hidden_dim

    # Pad batch to the f32 sublane count and labels to a full lane width so every
    # vreg / MXU tile is used and the output store is unmasked.
    B_pad = _round_up(B, _SUBLANES)
    L_pad = _round_up(L, _LANES)
    x_pad = jnp.pad(x, ((0, 0), (0, B_pad - B), (0, 0)))
    # Flatten in the wrapper (free layout plumbing) so the kernel sees a 2-D ref.
    x_flat = x_pad.reshape(T * B_pad, E)                   # [T*B_pad, E]

    # Permute gate columns once, wrapper-side: [i,f,g,o] -> [i,f,o,g].
    w_ih = _permute_gates_to_ifog(params["w_ih"])          # [E, 4H]
    w_hh = _permute_gates_to_ifog(params["w_hh"])          # [H, 4H]
    bias = _permute_gates_to_ifog(params["bias"])          # [1, 4H]

    w_lin_pad = jnp.pad(params["w_linear"], ((0, 0), (0, L_pad - L)))   # [H, Lp]
    b_lin_pad = jnp.pad(params["b_linear"], ((0, 0), (0, L_pad - L)))   # [1, Lp]

    kernel = functools.partial(acceptor_lstm_kernel,
                               seq_len=T, batch=B_pad, hidden_dim=H,
                               use_bf16_matmul=use_bf16_matmul)
    vmem = pl.BlockSpec(memory_space=pltpu.MemorySpace.VMEM)
    y_pad = pl.pallas_call(
        kernel,
        out_shape=jax.ShapeDtypeStruct((B_pad, L_pad), jnp.float32),
        in_specs=[vmem] * 6,
        out_specs=vmem,
    )(x_flat, w_ih, w_hh, bias, w_lin_pad, b_lin_pad)
    return y_pad[:B, :L]


def init_params(key, *, vocab, embedding_dim, hidden_dim, labels_dim, padding_idx):
    """Deterministic synthetic parameters matching the PyTorch module's shapes."""
    k_emb, k_wih, k_whh, k_bih, k_bhh, k_wl, k_bl = jax.random.split(key, 7)
    scale = 1.0 / jnp.sqrt(jnp.float32(hidden_dim))

    emb = jax.random.normal(k_emb, (vocab, embedding_dim), jnp.float32)
    emb = emb.at[padding_idx].set(0.0)   # padding_idx row frozen to zero, as nn.Embedding

    # PyTorch nn.LSTM weights: weight_ih [4H, E], weight_hh [4H, H], biases [4H].
    w_ih = jax.random.uniform(k_wih, (4 * hidden_dim, embedding_dim),
                              jnp.float32, -scale, scale)
    w_hh = jax.random.uniform(k_whh, (4 * hidden_dim, hidden_dim),
                              jnp.float32, -scale, scale)
    b_ih = jax.random.uniform(k_bih, (4 * hidden_dim,), jnp.float32, -scale, scale)
    b_hh = jax.random.uniform(k_bhh, (4 * hidden_dim,), jnp.float32, -scale, scale)

    # nn.Linear(hidden_dim, labels_dim): weight [L, H], bias [L].
    w_lin = jax.random.uniform(k_wl, (labels_dim, hidden_dim),
                               jnp.float32, -scale, scale)
    b_lin = jax.random.uniform(k_bl, (labels_dim,), jnp.float32, -scale, scale)

    return {
        "embedding": emb,
        "w_ih": jnp.transpose(w_ih),               # [E, 4H], gate order i,f,g,o
        "w_hh": jnp.transpose(w_hh),               # [H, 4H], gate order i,f,g,o
        "bias": (b_ih + b_hh).reshape(1, -1),      # [1, 4H], gate order i,f,g,o
        "w_linear": jnp.transpose(w_lin),          # [H, L]
        "b_linear": b_lin.reshape(1, -1),          # [1, L]
    }


def _reference_forward(tokens, params, *, hidden_dim):
    """Pure-JAX f32 reference with PyTorch nn.LSTM semantics (for checking)."""
    x = jnp.take(params["embedding"], tokens, axis=0).astype(jnp.float32)  # [B,T,E]
    B, T, E = x.shape
    H = hidden_dim
    w_ih, w_hh, b = params["w_ih"], params["w_hh"], params["bias"]

    def step(carry, x_t):
        h, c = carry
        gates = x_t @ w_ih + h @ w_hh + b                  # [B, 4H], order i,f,g,o
        i = jax.nn.sigmoid(gates[:, 0:H])
        f = jax.nn.sigmoid(gates[:, H:2 * H])
        g = jnp.tanh(gates[:, 2 * H:3 * H])
        o = jax.nn.sigmoid(gates[:, 3 * H:4 * H])
        c = f * c + i * g
        h = o * jnp.tanh(c)
        return (h, c), None

    (h_T, _), _ = lax.scan(step,
                           (jnp.zeros((B, H), jnp.float32),
                            jnp.zeros((B, H), jnp.float32)),
                           jnp.transpose(x, (1, 0, 2)))
    return h_T @ params["w_linear"] + params["b_linear"]


if __name__ == "__main__":
    # Small shapes consistent with the module's forward: batch=2, seq=8,
    # embedding_dim=32, hidden_dim=32, vocab=16, labels=5, padding_idx=0.
    B, T = 2, 8
    VOCAB, EMB, HID, LABELS = 16, 32, 32, 5
    PAD = 0

    key = jax.random.PRNGKey(0)
    k_params, k_tokens = jax.random.split(key)

    params = init_params(k_params, vocab=VOCAB, embedding_dim=EMB,
                         hidden_dim=HID, labels_dim=LABELS, padding_idx=PAD)
    tokens = jax.random.randint(k_tokens, (B, T), 0, VOCAB, dtype=jnp.int32)

    y = acceptor_lstm_forward(tokens, params, hidden_dim=HID)
    jax.block_until_ready(y)

    assert y.shape == (B, LABELS) and y.dtype == jnp.float32
    assert bool(jnp.all(jnp.isfinite(y)))

    # Loose tolerance: bf16 MXU operands vs the f32 reference.
    y_ref = _reference_forward(tokens, params, hidden_dim=HID)
    assert bool(jnp.allclose(y, y_ref, atol=1e-1, rtol=1e-1))

    print("KERNEL_OK")
</pallas_src>

<mosaic_0001>
module attributes {stable_mosaic.version = 11 : i64} {
  func.func @acceptor_lstm_kernel(%arg0: memref<64x32xf32, #tpu.memory_space<vmem>>, %arg1: memref<32x128xf32, #tpu.memory_space<vmem>>, %arg2: memref<32x128xf32, #tpu.memory_space<vmem>>, %arg3: memref<1x128xf32, #tpu.memory_space<vmem>>, %arg4: memref<32x128xf32, #tpu.memory_space<vmem>>, %arg5: memref<1x128xf32, #tpu.memory_space<vmem>>, %arg6: memref<8x128xf32, #tpu.memory_space<vmem>>) attributes {dimension_semantics = [], scalar_prefetch = 0 : i64, scratch_operands = 0 : i64, tpu.core_type = #tpu.core_type<tc>} {
    %c0 = arith.constant 0 : index
    %c0_0 = arith.constant 0 : index
    %0 = vector.load %arg0[%c0, %c0_0] : memref<64x32xf32, #tpu.memory_space<vmem>>, vector<64x32xf32>
    %c0_1 = arith.constant 0 : index
    %c0_2 = arith.constant 0 : index
    %1 = vector.load %arg1[%c0_1, %c0_2] : memref<32x128xf32, #tpu.memory_space<vmem>>, vector<32x128xf32>
    %c0_3 = arith.constant 0 : index
    %c0_4 = arith.constant 0 : index
    %2 = vector.load %arg2[%c0_3, %c0_4] : memref<32x128xf32, #tpu.memory_space<vmem>>, vector<32x128xf32>
    %c0_5 = arith.constant 0 : index
    %c0_6 = arith.constant 0 : index
    %3 = vector.load %arg4[%c0_5, %c0_6] : memref<32x128xf32, #tpu.memory_space<vmem>>, vector<32x128xf32>
    %4 = arith.truncf %0 : vector<64x32xf32> to vector<64x32xbf16>
    %5 = arith.truncf %1 : vector<32x128xf32> to vector<32x128xbf16>
    %6 = arith.truncf %2 : vector<32x128xf32> to vector<32x128xbf16>
    %7 = arith.truncf %3 : vector<32x128xf32> to vector<32x128xbf16>
    %cst = arith.constant dense<0.000000e+00> : vector<64x128xf32>
    %8 = tpu.matmul %4, %5, %cst {dimension_numbers = #tpu.dot_dimension_numbers<[1], [0], [0], [1], [0, 0, 1, 1], [], []>} : vector<64x32xbf16>, vector<32x128xbf16>, vector<64x128xf32> -> vector<64x128xf32>
    %c0_7 = arith.constant 0 : index
    %c0_8 = arith.constant 0 : index
    %9 = vector.load %arg3[%c0_7, %c0_8] : memref<1x128xf32, #tpu.memory_space<vmem>>, vector<1x128xf32>
    %10 = vector.broadcast %9 : vector<1x128xf32> to vector<64x128xf32>
    %11 = arith.addf %8, %10 : vector<64x128xf32>
    %cst_9 = arith.constant 0.000000e+00 : f32
    %12 = vector.broadcast %cst_9 : f32 to vector<8x32xf32>
    %cst_10 = arith.constant 0.000000e+00 : f32
    %13 = vector.broadcast %cst_10 : f32 to vector<8x32xf32>
    %14 = vector.extract_strided_slice %11 {offsets = [0, 0], sizes = [8, 128], strides = [1, 1]} : vector<64x128xf32> to vector<8x128xf32>
    %15 = arith.truncf %12 : vector<8x32xf32> to vector<8x32xbf16>
    %cst_11 = arith.constant dense<0.000000e+00> : vector<8x128xf32>
    %16 = tpu.matmul %15, %6, %cst_11 {dimension_numbers = #tpu.dot_dimension_numbers<[1], [0], [0], [1], [0, 0, 1, 1], [], []>} : vector<8x32xbf16>, vector<32x128xbf16>, vector<8x128xf32> -> vector<8x128xf32>
    %17 = arith.addf %14, %16 : vector<8x128xf32>
    %18 = vector.extract_strided_slice %17 {offsets = [0, 0], sizes = [8, 96], strides = [1, 1]} : vector<8x128xf32> to vector<8x96xf32>
    %19 = arith.negf %18 : vector<8x96xf32>
    %20 = math.exp %19 : vector<8x96xf32>
    %cst_12 = arith.constant 1.000000e+00 : f32
    %21 = vector.broadcast %cst_12 : f32 to vector<8x96xf32>
    %22 = arith.addf %21, %20 : vector<8x96xf32>
    %23 = arith.divf %21, %22 : vector<8x96xf32>
    %24 = vector.extract_strided_slice %23 {offsets = [0, 0], sizes = [8, 32], strides = [1, 1]} : vector<8x96xf32> to vector<8x32xf32>
    %25 = vector.extract_strided_slice %23 {offsets = [0, 32], sizes = [8, 32], strides = [1, 1]} : vector<8x96xf32> to vector<8x32xf32>
    %26 = vector.extract_strided_slice %23 {offsets = [0, 64], sizes = [8, 32], strides = [1, 1]} : vector<8x96xf32> to vector<8x32xf32>
    %27 = vector.extract_strided_slice %17 {offsets = [0, 96], sizes = [8, 32], strides = [1, 1]} : vector<8x128xf32> to vector<8x32xf32>
    %28 = math.tanh %27 : vector<8x32xf32>
    %29 = arith.mulf %25, %13 : vector<8x32xf32>
    %30 = arith.mulf %24, %28 : vector<8x32xf32>
    %31 = arith.addf %29, %30 : vector<8x32xf32>
    %32 = math.tanh %31 : vector<8x32xf32>
    %33 = arith.mulf %26, %32 : vector<8x32xf32>
    %34 = vector.extract_strided_slice %11 {offsets = [8, 0], sizes = [8, 128], strides = [1, 1]} : vector<64x128xf32> to vector<8x128xf32>
    %35 = arith.truncf %33 : vector<8x32xf32> to vector<8x32xbf16>
    %cst_13 = arith.constant dense<0.000000e+00> : vector<8x128xf32>
    %36 = tpu.matmul %35, %6, %cst_13 {dimension_numbers = #tpu.dot_dimension_numbers<[1], [0], [0], [1], [0, 0, 1, 1], [], []>} : vector<8x32xbf16>, vector<32x128xbf16>, vector<8x128xf32> -> vector<8x128xf32>
    %37 = arith.addf %34, %36 : vector<8x128xf32>
    %38 = vector.extract_strided_slice %37 {offsets = [0, 0], sizes = [8, 96], strides = [1, 1]} : vector<8x128xf32> to vector<8x96xf32>
    %39 = arith.negf %38 : vector<8x96xf32>
    %40 = math.exp %39 : vector<8x96xf32>
    %cst_14 = arith.constant 1.000000e+00 : f32
    %41 = vector.broadcast %cst_14 : f32 to vector<8x96xf32>
    %42 = arith.addf %41, %40 : vector<8x96xf32>
    %43 = arith.divf %41, %42 : vector<8x96xf32>
    %44 = vector.extract_strided_slice %43 {offsets = [0, 0], sizes = [8, 32], strides = [1, 1]} : vector<8x96xf32> to vector<8x32xf32>
    %45 = vector.extract_strided_slice %43 {offsets = [0, 32], sizes = [8, 32], strides = [1, 1]} : vector<8x96xf32> to vector<8x32xf32>
    %46 = vector.extract_strided_slice %43 {offsets = [0, 64], sizes = [8, 32], strides = [1, 1]} : vector<8x96xf32> to vector<8x32xf32>
    %47 = vector.extract_strided_slice %37 {offsets = [0, 96], sizes = [8, 32], strides = [1, 1]} : vector<8x128xf32> to vector<8x32xf32>
    %48 = math.tanh %47 : vector<8x32xf32>
    %49 = arith.mulf %45, %31 : vector<8x32xf32>
    %50 = arith.mulf %44, %48 : vector<8x32xf32>
    %51 = arith.addf %49, %50 : vector<8x32xf32>
    %52 = math.tanh %51 : vector<8x32xf32>
    %53 = arith.mulf %46, %52 : vector<8x32xf32>
    %54 = vector.extract_strided_slice %11 {offsets = [16, 0], sizes = [8, 128], strides = [1, 1]} : vector<64x128xf32> to vector<8x128xf32>
    %55 = arith.truncf %53 : vector<8x32xf32> to vector<8x32xbf16>
    %cst_15 = arith.constant dense<0.000000e+00> : vector<8x128xf32>
    %56 = tpu.matmul %55, %6, %cst_15 {dimension_numbers = #tpu.dot_dimension_numbers<[1], [0], [0], [1], [0, 0, 1, 1], [], []>} : vector<8x32xbf16>, vector<32x128xbf16>, vector<8x128xf32> -> vector<8x128xf32>
    %57 = arith.addf %54, %56 : vector<8x128xf32>
    %58 = vector.extract_strided_slice %57 {offsets = [0, 0], sizes = [8, 96], strides = [1, 1]} : vector<8x128xf32> to vector<8x96xf32>
    %59 = arith.negf %58 : vector<8x96xf32>
    %60 = math.exp %59 : vector<8x96xf32>
    %cst_16 = arith.constant 1.000000e+00 : f32
    %61 = vector.broadcast %cst_16 : f32 to vector<8x96xf32>
    %62 = arith.addf %61, %60 : vector<8x96xf32>
    %63 = arith.divf %61, %62 : vector<8x96xf32>
    %64 = vector.extract_strided_slice %63 {offsets = [0, 0], sizes = [8, 32], strides = [1, 1]} : vector<8x96xf32> to vector<8x32xf32>
    %65 = vector.extract_strided_slice %63 {offsets = [0, 32], sizes = [8, 32], strides = [1, 1]} : vector<8x96xf32> to vector<8x32xf32>
    %66 = vector.extract_strided_slice %63 {offsets = [0, 64], sizes = [8, 32], strides = [1, 1]} : vector<8x96xf32> to vector<8x32xf32>
    %67 = vector.extract_strided_slice %57 {offsets = [0, 96], sizes = [8, 32], strides = [1, 1]} : vector<8x128xf32> to vector<8x32xf32>
    %68 = math.tanh %67 : vector<8x32xf32>
    %69 = arith.mulf %65, %51 : vector<8x32xf32>
    %70 = arith.mulf %64, %68 : vector<8x32xf32>
    %71 = arith.addf %69, %70 : vector<8x32xf32>
    %72 = math.tanh %71 : vector<8x32xf32>
    %73 = arith.mulf %66, %72 : vector<8x32xf32>
    %74 = vector.extract_strided_slice %11 {offsets = [24, 0], sizes = [8, 128], strides = [1, 1]} : vector<64x128xf32> to vector<8x128xf32>
    %75 = arith.truncf %73 : vector<8x32xf32> to vector<8x32xbf16>
    %cst_17 = arith.constant dense<0.000000e+00> : vector<8x128xf32>
    %76 = tpu.matmul %75, %6, %cst_17 {dimension_numbers = #tpu.dot_dimension_numbers<[1], [0], [0], [1], [0, 0, 1, 1], [], []>} : vector<8x32xbf16>, vector<32x128xbf16>, vector<8x128xf32> -> vector<8x128xf32>
    %77 = arith.addf %74, %76 : vector<8x128xf32>
    %78 = vector.extract_strided_slice %77 {offsets = [0, 0], sizes = [8, 96], strides = [1, 1]} : vector<8x128xf32> to vector<8x96xf32>
    %79 = arith.negf %78 : vector<8x96xf32>
    %80 = math.exp %79 : vector<8x96xf32>
    %cst_18 = arith.constant 1.000000e+00 : f32
    %81 = vector.broadcast %cst_18 : f32 to vector<8x96xf32>
    %82 = arith.addf %81, %80 : vector<8x96xf32>
    %83 = arith.divf %81, %82 : vector<8x96xf32>
    %84 = vector.extract_strided_slice %83 {offsets = [0, 0], sizes = [8, 32], strides = [1, 1]} : vector<8x96xf32> to vector<8x32xf32>
    %85 = vector.extract_strided_slice %83 {offsets = [0, 32], sizes = [8, 32], strides = [1, 1]} : vector<8x96xf32> to vector<8x32xf32>
    %86 = vector.extract_strided_slice %83 {offsets = [0, 64], sizes = [8, 32], strides = [1, 1]} : vector<8x96xf32> to vector<8x32xf32>
    %87 = vector.extract_strided_slice %77 {offsets = [0, 96], sizes = [8, 32], strides = [1, 1]} : vector<8x128xf32> to vector<8x32xf32>
    %88 = math.tanh %87 : vector<8x32xf32>
    %89 = arith.mulf %85, %71 : vector<8x32xf32>
    %90 = arith.mulf %84, %88 : vector<8x32xf32>
    %91 = arith.addf %89, %90 : vector<8x32xf32>
    %92 = math.tanh %91 : vector<8x32xf32>
    %93 = arith.mulf %86, %92 : vector<8x32xf32>
    %94 = vector.extract_strided_slice %11 {offsets = [32, 0], sizes = [8, 128], strides = [1, 1]} : vector<64x128xf32> to vector<8x128xf32>
    %95 = arith.truncf %93 : vector<8x32xf32> to vector<8x32xbf16>
    %cst_19 = arith.constant dense<0.000000e+00> : vector<8x128xf32>
    %96 = tpu.matmul %95, %6, %cst_19 {dimension_numbers = #tpu.dot_dimension_numbers<[1], [0], [0], [1], [0, 0, 1, 1], [], []>} : vector<8x32xbf16>, vector<32x128xbf16>, vector<8x128xf32> -> vector<8x128xf32>
    %97 = arith.addf %94, %96 : vector<8x128xf32>
    %98 = vector.extract_strided_slice %97 {offsets = [0, 0], sizes = [8, 96], strides = [1, 1]} : vector<8x128xf32> to vector<8x96xf32>
    %99 = arith.negf %98 : vector<8x96xf32>
    %100 = math.exp %99 : vector<8x96xf32>
    %cst_20 = arith.constant 1.000000e+00 : f32
    %101 = vector.broadcast %cst_20 : f32 to vector<8x96xf32>
    %102 = arith.addf %101, %100 : vector<8x96xf32>
    %103 = arith.divf %101, %102 : vector<8x96xf32>
    %104 = vector.extract_strided_slice %103 {offsets = [0, 0], sizes = [8, 32], strides = [1, 1]} : vector<8x96xf32> to vector<8x32xf32>
    %105 = vector.extract_strided_slice %103 {offsets = [0, 32], sizes = [8, 32], strides = [1, 1]} : vector<8x96xf32> to vector<8x32xf32>
    %106 = vector.extract_strided_slice %103 {offsets = [0, 64], sizes = [8, 32], strides = [1, 1]} : vector<8x96xf32> to vector<8x32xf32>
    %107 = vector.extract_strided_slice %97 {offsets = [0, 96], sizes = [8, 32], strides = [1, 1]} : vector<8x128xf32> to vector<8x32xf32>
    %108 = math.tanh %107 : vector<8x32xf32>
    %109 = arith.mulf %105, %91 : vector<8x32xf32>
    %110 = arith.mulf %104, %108 : vector<8x32xf32>
    %111 = arith.addf %109, %110 : vector<8x32xf32>
    %112 = math.tanh %111 : vector<8x32xf32>
    %113 = arith.mulf %106, %112 : vector<8x32xf32>
    %114 = vector.extract_strided_slice %11 {offsets = [40, 0], sizes = [8, 128], strides = [1, 1]} : vector<64x128xf32> to vector<8x128xf32>
    %115 = arith.truncf %113 : vector<8x32xf32> to vector<8x32xbf16>
    %cst_21 = arith.constant dense<0.000000e+00> : vector<8x128xf32>
    %116 = tpu.matmul %115, %6, %cst_21 {dimension_numbers = #tpu.dot_dimension_numbers<[1], [0], [0], [1], [0, 0, 1, 1], [], []>} : vector<8x32xbf16>, vector<32x128xbf16>, vector<8x128xf32> -> vector<8x128xf32>
    %117 = arith.addf %114, %116 : vector<8x128xf32>
    %118 = vector.extract_strided_slice %117 {offsets = [0, 0], sizes = [8, 96], strides = [1, 1]} : vector<8x128xf32> to vector<8x96xf32>
    %119 = arith.negf %118 : vector<8x96xf32>
    %120 = math.exp %119 : vector<8x96xf32>
    %cst_22 = arith.constant 1.000000e+00 : f32
    %121 = vector.broadcast %cst_22 : f32 to vector<8x96xf32>
    %122 = arith.addf %121, %120 : vector<8x96xf32>
    %123 = arith.divf %121, %122 : vector<8x96xf32>
    %124 = vector.extract_strided_slice %123 {offsets = [0, 0], sizes = [8, 32], strides = [1, 1]} : vector<8x96xf32> to vector<8x32xf32>
    %125 = vector.extract_strided_slice %123 {offsets = [0, 32], sizes = [8, 32], strides = [1, 1]} : vector<8x96xf32> to vector<8x32xf32>
    %126 = vector.extract_strided_slice %123 {offsets = [0, 64], sizes = [8, 32], strides = [1, 1]} : vector<8x96xf32> to vector<8x32xf32>
    %127 = vector.extract_strided_slice %117 {offsets = [0, 96], sizes = [8, 32], strides = [1, 1]} : vector<8x128xf32> to vector<8x32xf32>
    %128 = math.tanh %127 : vector<8x32xf32>
    %129 = arith.mulf %125, %111 : vector<8x32xf32>
    %130 = arith.mulf %124, %128 : vector<8x32xf32>
    %131 = arith.addf %129, %130 : vector<8x32xf32>
    %132 = math.tanh %131 : vector<8x32xf32>
    %133 = arith.mulf %126, %132 : vector<8x32xf32>
    %134 = vector.extract_strided_slice %11 {offsets = [48, 0], sizes = [8, 128], strides = [1, 1]} : vector<64x128xf32> to vector<8x128xf32>
    %135 = arith.truncf %133 : vector<8x32xf32> to vector<8x32xbf16>
    %cst_23 = arith.constant dense<0.000000e+00> : vector<8x128xf32>
    %136 = tpu.matmul %135, %6, %cst_23 {dimension_numbers = #tpu.dot_dimension_numbers<[1], [0], [0], [1], [0, 0, 1, 1], [], []>} : vector<8x32xbf16>, vector<32x128xbf16>, vector<8x128xf32> -> vector<8x128xf32>
    %137 = arith.addf %134, %136 : vector<8x128xf32>
    %138 = vector.extract_strided_slice %137 {offsets = [0, 0], sizes = [8, 96], strides = [1, 1]} : vector<8x128xf32> to vector<8x96xf32>
    %139 = arith.negf %138 : vector<8x96xf32>
    %140 = math.exp %139 : vector<8x96xf32>
    %cst_24 = arith.constant 1.000000e+00 : f32
    %141 = vector.broadcast %cst_24 : f32 to vector<8x96xf32>
    %142 = arith.addf %141, %140 : vector<8x96xf32>
    %143 = arith.divf %141, %142 : vector<8x96xf32>
    %144 = vector.extract_strided_slice %143 {offsets = [0, 0], sizes = [8, 32], strides = [1, 1]} : vector<8x96xf32> to vector<8x32xf32>
    %145 = vector.extract_strided_slice %143 {offsets = [0, 32], sizes = [8, 32], strides = [1, 1]} : vector<8x96xf32> to vector<8x32xf32>
    %146 = vector.extract_strided_slice %143 {offsets = [0, 64], sizes = [8, 32], strides = [1, 1]} : vector<8x96xf32> to vector<8x32xf32>
    %147 = vector.extract_strided_slice %137 {offsets = [0, 96], sizes = [8, 32], strides = [1, 1]} : vector<8x128xf32> to vector<8x32xf32>
    %148 = math.tanh %147 : vector<8x32xf32>
    %149 = arith.mulf %145, %131 : vector<8x32xf32>
    %150 = arith.mulf %144, %148 : vector<8x32xf32>
    %151 = arith.addf %149, %150 : vector<8x32xf32>
    %152 = math.tanh %151 : vector<8x32xf32>
    %153 = arith.mulf %146, %152 : vector<8x32xf32>
    %154 = vector.extract_strided_slice %11 {offsets = [56, 0], sizes = [8, 128], strides = [1, 1]} : vector<64x128xf32> to vector<8x128xf32>
    %155 = arith.truncf %153 : vector<8x32xf32> to vector<8x32xbf16>
    %cst_25 = arith.constant dense<0.000000e+00> : vector<8x128xf32>
    %156 = tpu.matmul %155, %6, %cst_25 {dimension_numbers = #tpu.dot_dimension_numbers<[1], [0], [0], [1], [0, 0, 1, 1], [], []>} : vector<8x32xbf16>, vector<32x128xbf16>, vector<8x128xf32> -> vector<8x128xf32>
    %157 = arith.addf %154, %156 : vector<8x128xf32>
    %158 = vector.extract_strided_slice %157 {offsets = [0, 0], sizes = [8, 96], strides = [1, 1]} : vector<8x128xf32> to vector<8x96xf32>
    %159 = arith.negf %158 : vector<8x96xf32>
    %160 = math.exp %159 : vector<8x96xf32>
    %cst_26 = arith.constant 1.000000e+00 : f32
    %161 = vector.broadcast %cst_26 : f32 to vector<8x96xf32>
    %162 = arith.addf %161, %160 : vector<8x96xf32>
    %163 = arith.divf %161, %162 : vector<8x96xf32>
    %164 = vector.extract_strided_slice %163 {offsets = [0, 0], sizes = [8, 32], strides = [1, 1]} : vector<8x96xf32> to vector<8x32xf32>
    %165 = vector.extract_strided_slice %163 {offsets = [0, 32], sizes = [8, 32], strides = [1, 1]} : vector<8x96xf32> to vector<8x32xf32>
    %166 = vector.extract_strided_slice %163 {offsets = [0, 64], sizes = [8, 32], strides = [1, 1]} : vector<8x96xf32> to vector<8x32xf32>
    %167 = vector.extract_strided_slice %157 {offsets = [0, 96], sizes = [8, 32], strides = [1, 1]} : vector<8x128xf32> to vector<8x32xf32>
    %168 = math.tanh %167 : vector<8x32xf32>
    %169 = arith.mulf %165, %151 : vector<8x32xf32>
    %170 = arith.mulf %164, %168 : vector<8x32xf32>
    %171 = arith.addf %169, %170 : vector<8x32xf32>
    %172 = math.tanh %171 : vector<8x32xf32>
    %173 = arith.mulf %166, %172 : vector<8x32xf32>
    %174 = arith.truncf %173 : vector<8x32xf32> to vector<8x32xbf16>
    %cst_27 = arith.constant dense<0.000000e+00> : vector<8x128xf32>
    %175 = tpu.matmul %174, %7, %cst_27 {dimension_numbers = #tpu.dot_dimension_numbers<[1], [0], [0], [1], [0, 0, 1, 1], [], []>} : vector<8x32xbf16>, vector<32x128xbf16>, vector<8x128xf32> -> vector<8x128xf32>
    %c0_28 = arith.constant 0 : index
    %c0_29 = arith.constant 0 : index
    %176 = vector.load %arg5[%c0_28, %c0_29] : memref<1x128xf32, #tpu.memory_space<vmem>>, vector<1x128xf32>
    %177 = vector.broadcast %176 : vector<1x128xf32> to vector<8x128xf32>
    %178 = arith.addf %175, %177 : vector<8x128xf32>
    %c0_30 = arith.constant 0 : index
    %c0_31 = arith.constant 0 : index
    %179 = vector.load %arg6[%c0_30, %c0_31] : memref<8x128xf32, #tpu.memory_space<vmem>>, vector<8x128xf32>
    tpu.vector_store %arg6[%c0_30, %c0_31], %178 {strides = array<i32>} : memref<8x128xf32, #tpu.memory_space<vmem>>, vector<8x128xf32>,
    return
  }
}

</mosaic_0001>

<llo_original>
// kernel: tpu_custom_call.1
$region0: #{tpu_custom_call.1}
  #allocation0 [shape = 'u32[]', space=smem, size = 0x4, offset = 0x4, fixed_abs, tag = 'smem constant byte address 0x4 - core index']
  #allocation1 [shape = 'u32[72,128]{1,0:T(1,128)}', space=vmem, size = 0x9000, scoped, tag = 'internal scratch']
  %s0 = inlined_call_operand.vmem [shape: f32[64,32], index: 0, kind: input, shape index: {}]
  %s1 = inlined_call_operand.vmem [shape: f32[32,128], index: 1, kind: input, shape index: {}]
  %s2 = inlined_call_operand.vmem [shape: f32[32,128], index: 2, kind: input, shape index: {}]
  %s3 = inlined_call_operand.vmem [shape: f32[1,128], index: 3, kind: input, shape index: {}]
  %s4 = inlined_call_operand.vmem [shape: f32[32,128], index: 4, kind: input, shape index: {}]
  %s5 = inlined_call_operand.vmem [shape: f32[1,128], index: 5, kind: input, shape index: {}]
  %s6 = inlined_call_operand.hbm [shape: f32[8,128], index: 6, kind: output, shape index: {}]
  %s7 = sld [smem:[#allocation0]]
  $region34: #{tpu_custom_call.1} parent=0
    _
  %s9 = ssub.s32 1, %s7
  %s10 = scalar_select 0, %s9, %s7
  $region1: #{tpu_custom_call.1} parent=0
    #allocation2 [shape = 'u8[4096]{0}', space=vmem, size = 0x1000, scoped, tag = 'output window, operand 0, single buffered']
    #allocation3 [shape = 's32[1]{0}', space=sflag, size = 0x4, scoped, tag = 'scoped memory for tpu_custom_call.1']
    %11 = vsyncpa [#allocation3], 0
    // Predicated region
    $region2: #{tpu_custom_call.1} parent=1 // pred_check
      _
    $region3: #{tpu_custom_call.1} parent=1 // pred_check_branch
      %13 = sbr.rel (0) target = $region5
    $region4: #{tpu_custom_call.1} parent=1 // pred_region
      _
    $region5: #{tpu_custom_call.1} parent=1 // pred_fallthru
      _
    // Predicated region
    $region6: #{tpu_custom_call.1} parent=1 // pred_check
      _
    $region7: #{tpu_custom_call.1} parent=1 // pred_check_branch
      %15 = sbr.rel (0) target = $region9
    $region8: #{tpu_custom_call.1} parent=1 // pred_region
      _
    $region9: #{tpu_custom_call.1} parent=1 // pred_fallthru
      _
    // Predicated region
    $region10: #{tpu_custom_call.1} parent=1 // pred_check
      _
    $region11: #{tpu_custom_call.1} parent=1 // pred_check_branch
      %17 = sbr.rel (0) target = $region13
    $region12: #{tpu_custom_call.1} parent=1 // pred_region
      _
    $region13: #{tpu_custom_call.1} parent=1 // pred_fallthru
      _
    // Predicated region
    $region14: #{tpu_custom_call.1} parent=1 // pred_check
      _
    $region15: #{tpu_custom_call.1} parent=1 // pred_check_branch
      %19 = sbr.rel (0) target = $region17
    $region16: #{tpu_custom_call.1} parent=1 // pred_region
      _
    $region17: #{tpu_custom_call.1} parent=1 // pred_fallthru
      _
    // Predicated region
    $region18: #{tpu_custom_call.1} parent=1 // pred_check
      _
    $region19: #{tpu_custom_call.1} parent=1 // pred_check_branch
      %21 = sbr.rel (0) target = $region21
    $region20: #{tpu_custom_call.1} parent=1 // pred_region
      _
    $region21: #{tpu_custom_call.1} parent=1 // pred_fallthru
      _
    // Predicated region
    $region22: #{tpu_custom_call.1} parent=1 // pred_check
      _
    $region23: #{tpu_custom_call.1} parent=1 // pred_check_branch
      %23 = sbr.rel (0) target = $region25
    $region24: #{tpu_custom_call.1} parent=1 // pred_region
      _
    $region25: #{tpu_custom_call.1} parent=1 // pred_fallthru
      _
    %v25 = vld [vmem:[%s0] sm:$0xff]
    %v26 = vld [vmem:[%s0 + $0x8] sm:$0xff]
    %v27 = vld [vmem:[%s0 + $0x10] sm:$0xff]
    %v28 = vld [vmem:[%s0 + $0x18] sm:$0xff]
    %v29 = vld [vmem:[%s0 + $0x20] sm:$0xff]
    %v30 = vld [vmem:[%s0 + $0x28] sm:$0xff]
    %v31 = vld [vmem:[%s0 + $0x30] sm:$0xff]
    %v32 = vld [vmem:[%s0 + $0x38] sm:$0xff]
    %v33 = vld [vmem:[%s1] sm:$0xff]
    %v34 = vld [vmem:[%s1 + $0x8] sm:$0xff]
    %v35 = vld [vmem:[%s1 + $0x10] sm:$0xff]
    %v36 = vld [vmem:[%s1 + $0x18] sm:$0xff]
    %v37 = vld [vmem:[%s2] sm:$0xff]
    %v38 = vld [vmem:[%s2 + $0x8] sm:$0xff]
    %v39 = vld [vmem:[%s2 + $0x10] sm:$0xff]
    %v40 = vld [vmem:[%s2 + $0x18] sm:$0xff]
    %v41 = vld [vmem:[%s4] sm:$0xff]
    %v42 = vld [vmem:[%s4 + $0x8] sm:$0xff]
    %v43 = vld [vmem:[%s4 + $0x10] sm:$0xff]
    %v44 = vld [vmem:[%s4 + $0x18] sm:$0xff]
    %v45 = vpack.c.bf16 %v26, %v25
    %v46 = vpack.c.bf16 %v28, %v27
    %v47 = vpack.c.bf16 %v30, %v29
    %v48 = vpack.c.bf16 %v32, %v31
    %v49 = vpack.c.bf16 %v34, %v33
    %v50 = vpack.c.bf16 %v36, %v35
    %v51 = vpack.c.bf16 %v38, %v37
    %v52 = vpack.c.bf16 %v40, %v39
    %v53 = vpack.c.bf16 %v42, %v41
    %v54 = vpack.c.bf16 %v44, %v43
    %v55 = vld [vmem:[%s3] sm:$0x1]
    %v57 = vperm.slane %v55, 0
    %vm59 = vcmask 261120
    %v61 = vsel %vm59, %v45, 0
    %v64 = vsel %vm59, %v46, 0
    %v67 = vsel %vm59, %v47, 0
    %v70 = vsel %vm59, %v48, 0
    %72 = vmatpush.bf16.msra.mxu0 0
    %73 = vmatpush.bf16.msra.mxu0 0
    %74 = vmatpush.bf16.msra.mxu0 0
    %75 = vmatpush.bf16.msra.mxu0 0
    %76 = vmatpush.bf16.msra.mxu0 0
    %77 = vmatpush.bf16.msra.mxu0 0
    %78 = vmatpush.bf16.msra.mxu0 %v50
    %79 = vmatpush.bf16.msra.mxu0 %v49
    %80 = vmatmul.bf16.gmra.mxu0 %v61
    %v81 = vpop.f32.mrf.mxu0
    %v82 = vadd.f32 %v57, %v81
    %v83 = vpop.f32.mrf.mxu0
    %v84 = vadd.f32 %v57, %v83
    %85 = vmatmul.bf16.gmra.mxu0 %v64
    %v86 = vpop.f32.mrf.mxu0
    %v87 = vadd.f32 %v57, %v86
    %v88 = vpop.f32.mrf.mxu0
    %v89 = vadd.f32 %v57, %v88
    %90 = vmatmul.bf16.gmra.mxu0 %v67
    %v91 = vpop.f32.mrf.mxu0
    %v92 = vadd.f32 %v57, %v91
    %v93 = vpop.f32.mrf.mxu0
    %v94 = vadd.f32 %v57, %v93
    %95 = vmatmul.bf16.gmra.mxu0 %v70
    %v96 = vpop.f32.mrf.mxu0
    %v97 = vadd.f32 %v57, %v96
    %v98 = vpop.f32.mrf.mxu0
    %v99 = vadd.f32 %v57, %v98
    %100 = vdwg.mxu0
    %v102 = vsel %vm59, 0, 0
    %104 = vmatpush.bf16.msra.mxu0 0
    %105 = vmatpush.bf16.msra.mxu0 0
    %106 = vmatpush.bf16.msra.mxu0 0
    %107 = vmatpush.bf16.msra.mxu0 0
    %108 = vmatpush.bf16.msra.mxu0 0
    %109 = vmatpush.bf16.msra.mxu0 0
    %110 = vmatpush.bf16.msra.mxu0 %v52
    %111 = vmatpush.bf16.msra.mxu0 %v51
    %112 = vmatmul.bf16.gmra.mxu0 %v102
    %v113 = vpop.f32.mrf.mxu0
    %v114 = vadd.f32 0.0, %v113
    %v115 = vpop.f32.mrf.mxu0
    %116 = vdwg.mxu0
    %v117 = vadd.f32 %v82, %v114
    %v118 = vxor.u32 %v117, 2147483648
    %v119 = vmul.f32 %v118, 1.442695
    %v120 = vpow.pop %v119
    %v121 = vadd.f32 %v120, 1.0
    %v122 = vrcp.pop %v121
    %v123 = vmul.f32 %v121, %v122
    %v124 = vsub.f32 1.0, %v123
    %v125 = vmul.f32 %v122, %v124
    %v126 = vadd.f32 %v122, %v125
    %vm127 = vweird.f32 %v121
    %vm128 = vweird.f32 %v122
    %vm129 = vmor %vm127, %vm128
    %v130 = vsel %vm129, %v122, %v126
    %v131 = vand.u32 2147483647, %v121
    %vm132 = vcmp.eq.f32.partialorder %v131, 8.507059e+37
    %v133 = vand.u32 %v121, 2147483648
    %v134 = vor.u32 1.1754944e-38, %v133
    %v135 = vsel %vm132, %v134, %v130
    %v136 = vmul.f32 1.0, %v135
    %v137 = vtanh.pop %v117
    %v138 = vmul.f32 %v136, 0.0
    %140 = vrot.lane.b32.xlu0 %v137, 32
    %v141 = vpop.permute.xlu0 %140
    %v143 = vmul.f32 %v136, %v141
    %145 = vrot.lane.b32.xlu0 %v143, 32
    %v146 = vpop.permute.xlu0 %145
    %v148 = vadd.f32 %v138, %v146
    %v149 = vtanh.pop %v148
    %151 = vrot.lane.b32.xlu0 %v149, 32
    %v152 = vpop.permute.xlu0 %151
    %v154 = vmul.f32 %v136, %v152
    %v155 = vpack.c.bf16 %v154, %v154
    %157 = vrot.lane.b32.xlu0 %v155, 64
    %v158 = vpop.permute.xlu0 %157
    %v160 = vsel %vm59, %v158, 0
    %162 = vmatpush.bf16.msra.mxu0 0
    %163 = vmatpush.bf16.msra.mxu0 0
    %164 = vmatpush.bf16.msra.mxu0 0
    %165 = vmatpush.bf16.msra.mxu0 0
    %166 = vmatpush.bf16.msra.mxu0 0
    %167 = vmatpush.bf16.msra.mxu0 0
    %168 = vmatpush.bf16.msra.mxu0 %v52
    %169 = vmatpush.bf16.msra.mxu0 %v51
    %170 = vmatmul.bf16.gmra.mxu0 %v160
    %v171 = vpop.f32.mrf.mxu0
    %v172 = vadd.f32 0.0, %v171
    %v173 = vpop.f32.mrf.mxu0
    %174 = vdwg.mxu0
    %v175 = vadd.f32 %v84, %v172
    %v176 = vxor.u32 %v175, 2147483648
    %v177 = vmul.f32 %v176, 1.442695
    %v178 = vpow.pop %v177
    %v179 = vadd.f32 %v178, 1.0
    %v180 = vrcp.pop %v179
    %v181 = vmul.f32 %v179, %v180
    %v182 = vsub.f32 1.0, %v181
    %v183 = vmul.f32 %v180, %v182
    %v184 = vadd.f32 %v180, %v183
    %vm185 = vweird.f32 %v179
    %vm186 = vweird.f32 %v180
    %vm187 = vmor %vm185, %vm186
    %v188 = vsel %vm187, %v180, %v184
    %v189 = vand.u32 2147483647, %v179
    %vm190 = vcmp.eq.f32.partialorder %v189, 8.507059e+37
    %v191 = vand.u32 %v179, 2147483648
    %v192 = vor.u32 1.1754944e-38, %v191
    %v193 = vsel %vm190, %v192, %v188
    %v194 = vmul.f32 1.0, %v193
    %v195 = vtanh.pop %v175
    %v196 = vmul.f32 %v194, %v148
    %198 = vrot.lane.b32.xlu0 %v195, 32
    %v199 = vpop.permute.xlu0 %198
    %v201 = vmul.f32 %v194, %v199
    %203 = vrot.lane.b32.xlu0 %v201, 32
    %v204 = vpop.permute.xlu0 %203
    %v206 = vadd.f32 %v196, %v204
    %v207 = vtanh.pop %v206
    %209 = vrot.lane.b32.xlu0 %v207, 32
    %v210 = vpop.permute.xlu0 %209
    %v212 = vmul.f32 %v194, %v210
    %v213 = vpack.c.bf16 %v212, %v212
    %215 = vrot.lane.b32.xlu0 %v213, 64
    %v216 = vpop.permute.xlu0 %215
    %v218 = vsel %vm59, %v216, 0
    %220 = vmatpush.bf16.msra.mxu0 0
    %221 = vmatpush.bf16.msra.mxu0 0
    %222 = vmatpush.bf16.msra.mxu0 0
    %223 = vmatpush.bf16.msra.mxu0 0
    %224 = vmatpush.bf16.msra.mxu0 0
    %225 = vmatpush.bf16.msra.mxu0 0
    %226 = vmatpush.bf16.msra.mxu0 %v52
    %227 = vmatpush.bf16.msra.mxu0 %v51
    %228 = vmatmul.bf16.gmra.mxu0 %v218
    %v229 = vpop.f32.mrf.mxu0
    %v230 = vadd.f32 0.0, %v229
    %v231 = vpop.f32.mrf.mxu0
    %232 = vdwg.mxu0
    %v233 = vadd.f32 %v87, %v230
    %v234 = vxor.u32 %v233, 2147483648
    %v235 = vmul.f32 %v234, 1.442695
    %v236 = vpow.pop %v235
    %v237 = vadd.f32 %v236, 1.0
    %v238 = vrcp.pop %v237
    %v239 = vmul.f32 %v237, %v238
    %v240 = vsub.f32 1.0, %v239
    %v241 = vmul.f32 %v238, %v240
    %v242 = vadd.f32 %v238, %v241
    %vm243 = vweird.f32 %v237
    %vm244 = vweird.f32 %v238
    %vm245 = vmor %vm243, %vm244
    %v246 = vsel %vm245, %v238, %v242
    %v247 = vand.u32 2147483647, %v237
    %vm248 = vcmp.eq.f32.partialorder %v247, 8.507059e+37
    %v249 = vand.u32 %v237, 2147483648
    %v250 = vor.u32 1.1754944e-38, %v249
    %v251 = vsel %vm248, %v250, %v246
    %v252 = vmul.f32 1.0, %v251
    %v253 = vtanh.pop %v233
    %v254 = vmul.f32 %v252, %v206
    %256 = vrot.lane.b32.xlu0 %v253, 32
    %v257 = vpop.permute.xlu0 %256
    %v259 = vmul.f32 %v252, %v257
    %261 = vrot.lane.b32.xlu0 %v259, 32
    %v262 = vpop.permute.xlu0 %261
    %v264 = vadd.f32 %v254, %v262
    %v265 = vtanh.pop %v264
    %267 = vrot.lane.b32.xlu0 %v265, 32
    %v268 = vpop.permute.xlu0 %267
    %v270 = vmul.f32 %v252, %v268
    %v271 = vpack.c.bf16 %v270, %v270
    %273 = vrot.lane.b32.xlu0 %v271, 64
    %v274 = vpop.permute.xlu0 %273
    %v276 = vsel %vm59, %v274, 0
    %278 = vmatpush.bf16.msra.mxu0 0
    %279 = vmatpush.bf16.msra.mxu0 0
    %280 = vmatpush.bf16.msra.mxu0 0
    %281 = vmatpush.bf16.msra.mxu0 0
    %282 = vmatpush.bf16.msra.mxu0 0
    %283 = vmatpush.bf16.msra.mxu0 0
    %284 = vmatpush.bf16.msra.mxu0 %v52
    %285 = vmatpush.bf16.msra.mxu0 %v51
    %286 = vmatmul.bf16.gmra.mxu0 %v276
    %v287 = vpop.f32.mrf.mxu0
    %v288 = vadd.f32 0.0, %v287
    %v289 = vpop.f32.mrf.mxu0
    %290 = vdwg.mxu0
    %v291 = vadd.f32 %v89, %v288
    %v292 = vxor.u32 %v291, 2147483648
    %v293 = vmul.f32 %v292, 1.442695
    %v294 = vpow.pop %v293
    %v295 = vadd.f32 %v294, 1.0
    %v296 = vrcp.pop %v295
    %v297 = vmul.f32 %v295, %v296
    %v298 = vsub.f32 1.0, %v297
    %v299 = vmul.f32 %v296, %v298
    %v300 = vadd.f32 %v296, %v299
    %vm301 = vweird.f32 %v295
    %vm302 = vweird.f32 %v296
    %vm303 = vmor %vm301, %vm302
    %v304 = vsel %vm303, %v296, %v300
    %v305 = vand.u32 2147483647, %v295
    %vm306 = vcmp.eq.f32.partialorder %v305, 8.507059e+37
    %v307 = vand.u32 %v295, 2147483648
    %v308 = vor.u32 1.1754944e-38, %v307
    %v309 = vsel %vm306, %v308, %v304
    %v310 = vmul.f32 1.0, %v309
    %v311 = vtanh.pop %v291
    %v312 = vmul.f32 %v310, %v264
    %314 = vrot.lane.b32.xlu0 %v311, 32
    %v315 = vpop.permute.xlu0 %314
    %v317 = vmul.f32 %v310, %v315
    %319 = vrot.lane.b32.xlu0 %v317, 32
    %v320 = vpop.permute.xlu0 %319
    %v322 = vadd.f32 %v312, %v320
    %v323 = vtanh.pop %v322
    %325 = vrot.lane.b32.xlu0 %v323, 32
    %v326 = vpop.permute.xlu0 %325
    %v328 = vmul.f32 %v310, %v326
    %v329 = vpack.c.bf16 %v328, %v328
    %331 = vrot.lane.b32.xlu0 %v329, 64
    %v332 = vpop.permute.xlu0 %331
    %v334 = vsel %vm59, %v332, 0
    %336 = vmatpush.bf16.msra.mxu0 0
    %337 = vmatpush.bf16.msra.mxu0 0
    %338 = vmatpush.bf16.msra.mxu0 0
    %339 = vmatpush.bf16.msra.mxu0 0
    %340 = vmatpush.bf16.msra.mxu0 0
    %341 = vmatpush.bf16.msra.mxu0 0
    %342 = vmatpush.bf16.msra.mxu0 %v52
    %343 = vmatpush.bf16.msra.mxu0 %v51
    %344 = vmatmul.bf16.gmra.mxu0 %v334
    %v345 = vpop.f32.mrf.mxu0
    %v346 = vadd.f32 0.0, %v345
    %v347 = vpop.f32.mrf.mxu0
    %348 = vdwg.mxu0
    %v349 = vadd.f32 %v92, %v346
    %v350 = vxor.u32 %v349, 2147483648
    %v351 = vmul.f32 %v350, 1.442695
    %v352 = vpow.pop %v351
    %v353 = vadd.f32 %v352, 1.0
    %v354 = vrcp.pop %v353
    %v355 = vmul.f32 %v353, %v354
    %v356 = vsub.f32 1.0, %v355
    %v357 = vmul.f32 %v354, %v356
    %v358 = vadd.f32 %v354, %v357
    %vm359 = vweird.f32 %v353
    %vm360 = vweird.f32 %v354
    %vm361 = vmor %vm359, %vm360
    %v362 = vsel %vm361, %v354, %v358
    %v363 = vand.u32 2147483647, %v353
    %vm364 = vcmp.eq.f32.partialorder %v363, 8.507059e+37
    %v365 = vand.u32 %v353, 2147483648
    %v366 = vor.u32 1.1754944e-38, %v365
    %v367 = vsel %vm364, %v366, %v362
    %v368 = vmul.f32 1.0, %v367
    %v369 = vtanh.pop %v349
    %v370 = vmul.f32 %v368, %v322
    %372 = vrot.lane.b32.xlu0 %v369, 32
    %v373 = vpop.permute.xlu0 %372
    %v375 = vmul.f32 %v368, %v373
    %377 = vrot.lane.b32.xlu0 %v375, 32
    %v378 = vpop.permute.xlu0 %377
    %v380 = vadd.f32 %v370, %v378
    %v381 = vtanh.pop %v380
    %383 = vrot.lane.b32.xlu0 %v381, 32
    %v384 = vpop.permute.xlu0 %383
    %v386 = vmul.f32 %v368, %v384
    %v387 = vpack.c.bf16 %v386, %v386
    %389 = vrot.lane.b32.xlu0 %v387, 64
    %v390 = vpop.permute.xlu0 %389
    %v392 = vsel %vm59, %v390, 0
    %394 = vmatpush.bf16.msra.mxu0 0
    %395 = vmatpush.bf16.msra.mxu0 0
    %396 = vmatpush.bf16.msra.mxu0 0
    %397 = vmatpush.bf16.msra.mxu0 0
    %398 = vmatpush.bf16.msra.mxu0 0
    %399 = vmatpush.bf16.msra.mxu0 0
    %400 = vmatpush.bf16.msra.mxu0 %v52
    %401 = vmatpush.bf16.msra.mxu0 %v51
    %402 = vmatmul.bf16.gmra.mxu0 %v392
    %v403 = vpop.f32.mrf.mxu0
    %v404 = vadd.f32 0.0, %v403
    %v405 = vpop.f32.mrf.mxu0
    %406 = vdwg.mxu0
    %v407 = vadd.f32 %v94, %v404
    %v408 = vxor.u32 %v407, 2147483648
    %v409 = vmul.f32 %v408, 1.442695
    %v410 = vpow.pop %v409
    %v411 = vadd.f32 %v410, 1.0
    %v412 = vrcp.pop %v411
    %v413 = vmul.f32 %v411, %v412
    %v414 = vsub.f32 1.0, %v413
    %v415 = vmul.f32 %v412, %v414
    %v416 = vadd.f32 %v412, %v415
    %vm417 = vweird.f32 %v411
    %vm418 = vweird.f32 %v412
    %vm419 = vmor %vm417, %vm418
    %v420 = vsel %vm419, %v412, %v416
    %v421 = vand.u32 2147483647, %v411
    %vm422 = vcmp.eq.f32.partialorder %v421, 8.507059e+37
    %v423 = vand.u32 %v411, 2147483648
    %v424 = vor.u32 1.1754944e-38, %v423
    %v425 = vsel %vm422, %v424, %v420
    %v426 = vmul.f32 1.0, %v425
    %v427 = vtanh.pop %v407
    %v428 = vmul.f32 %v426, %v380
    %430 = vrot.lane.b32.xlu0 %v427, 32
    %v431 = vpop.permute.xlu0 %430
    %v433 = vmul.f32 %v426, %v431
    %435 = vrot.lane.b32.xlu0 %v433, 32
    %v436 = vpop.permute.xlu0 %435
    %v438 = vadd.f32 %v428, %v436
    %v439 = vtanh.pop %v438
    %441 = vrot.lane.b32.xlu0 %v439, 32
    %v442 = vpop.permute.xlu0 %441
    %v444 = vmul.f32 %v426, %v442
    %v445 = vpack.c.bf16 %v444, %v444
    %447 = vrot.lane.b32.xlu0 %v445, 64
    %v448 = vpop.permute.xlu0 %447
    %v450 = vsel %vm59, %v448, 0
    %452 = vmatpush.bf16.msra.mxu0 0
    %453 = vmatpush.bf16.msra.mxu0 0
    %454 = vmatpush.bf16.msra.mxu0 0
    %455 = vmatpush.bf16.msra.mxu0 0
    %456 = vmatpush.bf16.msra.mxu0 0
    %457 = vmatpush.bf16.msra.mxu0 0
    %458 = vmatpush.bf16.msra.mxu0 %v52
    %459 = vmatpush.bf16.msra.mxu0 %v51
    %460 = vmatmul.bf16.gmra.mxu0 %v450
    %v461 = vpop.f32.mrf.mxu0
    %v462 = vadd.f32 0.0, %v461
    %v463 = vpop.f32.mrf.mxu0
    %464 = vdwg.mxu0
    %v465 = vadd.f32 %v97, %v462
    %v466 = vxor.u32 %v465, 2147483648
    %v467 = vmul.f32 %v466, 1.442695
    %v468 = vpow.pop %v467
    %v469 = vadd.f32 %v468, 1.0
    %v470 = vrcp.pop %v469
    %v471 = vmul.f32 %v469, %v470
    %v472 = vsub.f32 1.0, %v471
    %v473 = vmul.f32 %v470, %v472
    %v474 = vadd.f32 %v470, %v473
    %vm475 = vweird.f32 %v469
    %vm476 = vweird.f32 %v470
    %vm477 = vmor %vm475, %vm476
    %v478 = vsel %vm477, %v470, %v474
    %v479 = vand.u32 2147483647, %v469
    %vm480 = vcmp.eq.f32.partialorder %v479, 8.507059e+37
    %v481 = vand.u32 %v469, 2147483648
    %v482 = vor.u32 1.1754944e-38, %v481
    %v483 = vsel %vm480, %v482, %v478
    %v484 = vmul.f32 1.0, %v483
    %v485 = vtanh.pop %v465
    %v486 = vmul.f32 %v484, %v438
    %488 = vrot.lane.b32.xlu0 %v485, 32
    %v489 = vpop.permute.xlu0 %488
    %v491 = vmul.f32 %v484, %v489
    %493 = vrot.lane.b32.xlu0 %v491, 32
    %v494 = vpop.permute.xlu0 %493
    %v496 = vadd.f32 %v486, %v494
    %v497 = vtanh.pop %v496
    %499 = vrot.lane.b32.xlu0 %v497, 32
    %v500 = vpop.permute.xlu0 %499
    %v502 = vmul.f32 %v484, %v500
    %v503 = vpack.c.bf16 %v502, %v502
    %505 = vrot.lane.b32.xlu0 %v503, 64
    %v506 = vpop.permute.xlu0 %505
    %v508 = vsel %vm59, %v506, 0
    %510 = vmatpush.bf16.msra.mxu0 0
    %511 = vmatpush.bf16.msra.mxu0 0
    %512 = vmatpush.bf16.msra.mxu0 0
    %513 = vmatpush.bf16.msra.mxu0 0
    %514 = vmatpush.bf16.msra.mxu0 0
    %515 = vmatpush.bf16.msra.mxu0 0
    %516 = vmatpush.bf16.msra.mxu0 %v52
    %517 = vmatpush.bf16.msra.mxu0 %v51
    %518 = vmatmul.bf16.gmra.mxu0 %v508
    %v519 = vpop.f32.mrf.mxu0
    %v520 = vadd.f32 0.0, %v519
    %v521 = vpop.f32.mrf.mxu0
    %522 = vdwg.mxu0
    %v523 = vadd.f32 %v99, %v520
    %v524 = vxor.u32 %v523, 2147483648
    %v525 = vmul.f32 %v524, 1.442695
    %v526 = vpow.pop %v525
    %v527 = vadd.f32 %v526, 1.0
    %v528 = vrcp.pop %v527
    %v529 = vmul.f32 %v527, %v528
    %v530 = vsub.f32 1.0, %v529
    %v531 = vmul.f32 %v528, %v530
    %v532 = vadd.f32 %v528, %v531
    %vm533 = vweird.f32 %v527
    %vm534 = vweird.f32 %v528
    %vm535 = vmor %vm533, %vm534
    %v536 = vsel %vm535, %v528, %v532
    %v537 = vand.u32 2147483647, %v527
    %vm538 = vcmp.eq.f32.partialorder %v537, 8.507059e+37
    %v539 = vand.u32 %v527, 2147483648
    %v540 = vor.u32 1.1754944e-38, %v539
    %v541 = vsel %vm538, %v540, %v536
    %v542 = vmul.f32 1.0, %v541
    %v543 = vtanh.pop %v523
    %v544 = vmul.f32 %v542, %v496
    %546 = vrot.lane.b32.xlu0 %v543, 32
    %v547 = vpop.permute.xlu0 %546
    %v549 = vmul.f32 %v542, %v547
    %551 = vrot.lane.b32.xlu0 %v549, 32
    %v552 = vpop.permute.xlu0 %551
    %v554 = vadd.f32 %v544, %v552
    %v555 = vtanh.pop %v554
    %557 = vrot.lane.b32.xlu0 %v555, 32
    %v558 = vpop.permute.xlu0 %557
    %v560 = vmul.f32 %v542, %v558
    %v561 = vpack.c.bf16 %v560, %v560
    %v562 = vld [vmem:[%s5] sm:$0x1]
    %v564 = vperm.slane %v562, 0
    %567 = vrot.lane.b32.xlu0 %v561, 64
    %v568 = vpop.permute.xlu0 %567
    %v570 = vsel %vm59, %v568, 0
    %572 = vmatpush.bf16.msra.mxu0 0
    %573 = vmatpush.bf16.msra.mxu0 0
    %574 = vmatpush.bf16.msra.mxu0 0
    %575 = vmatpush.bf16.msra.mxu0 0
    %576 = vmatpush.bf16.msra.mxu0 0
    %577 = vmatpush.bf16.msra.mxu0 0
    %578 = vmatpush.bf16.msra.mxu0 %v54
    %579 = vmatpush.bf16.msra.mxu0 %v53
    %580 = vmatmul.bf16.gmra.mxu0 %v570
    %v581 = vpop.f32.mrf.mxu0
    %v582 = vadd.f32 %v564, %v581
    %v583 = vpop.f32.mrf.mxu0
    %584 = vdwg.mxu0
    %585 = vst [vmem:[#allocation2] sm:$0xff] %v582
    // Predicated region
    $region26: #{tpu_custom_call.1} parent=1 // pred_check
      _
    $region27: #{tpu_custom_call.1} parent=1 // pred_check_branch
      %587 = sbr.rel (0) target = $region29
    $region28: #{tpu_custom_call.1} parent=1 // pred_region
      %589 = vsyncadd [#allocation3], 0
      %s591 = sshll.u32 [#allocation2], 4
      %s592 = int_to_ptr.vmem [resolvable:$true] %s591
      %s593 = sshll.u32 %s6, 4
      %s594 = int_to_ptr.hbm [resolvable:$true] %s593
      %596 = dma.vmem_to_hbm [thread:$0]  %s592, 128, %s594, [#allocation3]
    $region29: #{tpu_custom_call.1} parent=1 // pred_fallthru
      _
    // Predicated region
    $region30: #{tpu_custom_call.1} parent=1 // pred_check
      _
    $region31: #{tpu_custom_call.1} parent=1 // pred_check_branch
      %598 = sbr.rel (0) target = $region33
    $region32: #{tpu_custom_call.1} parent=1 // pred_region
      %600 = dma.done [#allocation3], 128
    $region33: #{tpu_custom_call.1} parent=1 // pred_fallthru
      _
    %601 = vsyncpa [#allocation3], 1

</llo_original>
